<compile_context>
chip_gen: v5e
topology: v5e:2x2
jax: 0.10.0
libtpu: 0.0.40
codegen_flags: <defaults>
</compile_context>

<pallas_src>
import functools
import math

import jax
import jax.numpy as jnp
from jax.experimental import pallas as pl
from jax.experimental.pallas import tpu as pltpu


LOG_STD_MIN = -10.0
LOG_STD_MAX = 0.5


# ----------------------------------------------------------------------------
# Kernel: one batch tile, all E members fused into a 128-wide matmul chain.
# ----------------------------------------------------------------------------
def _ensemble_kernel(s_ref, a_ref, w1s_ref, w1a_ref, wbig_ref, bias_ref,
                     out_ref, *, n_obs, hidden, n_ensembles):
  f32 = jnp.float32
  eh = n_ensembles * hidden
  mm = wbig_ref.dtype                       # matmul operand dtype (bf16 or f32)

  bias = bias_ref[...]                      # (7, E*H) f32
  b1, b2, b3, b4 = bias[0:1], bias[1:2], bias[2:3], bias[3:4]
  bh, dstd, keep_raw = bias[4:5], bias[5:6], bias[6:7]

  # Layer 1 (input normalization folded into the weights by the wrapper).
  s = s_ref[...].astype(mm)                 # (TB, n_obs)
  a = a_ref[...].astype(mm)                 # (TB, n_act)
  h = jnp.maximum(
      jnp.dot(s, w1s_ref[...], preferred_element_type=f32)
      + jnp.dot(a, w1a_ref[...], preferred_element_type=f32)
      + b1, 0.0)                            # (TB, E*H) f32

  # Layers 2-4: block-diagonal (E*H, E*H) weights keep members in their lanes.
  for l, b in enumerate((b2, b3, b4)):
    w = wbig_ref[l * eh:(l + 1) * eh, :]
    h = jnp.maximum(
        jnp.dot(h.astype(mm), w, preferred_element_type=f32) + b, 0.0)

  # Fused block-diagonal head: per-member lanes = [mean|logstd|reward|done|pad].
  wh = wbig_ref[3 * eh:4 * eh, :]
  raw = jnp.dot(h.astype(mm), wh, preferred_element_type=f32) + bh

  # Std lanes: clip -> exp -> * delta_std (post-clip de-norm).  Other lanes raw.
  clipped = jnp.clip(raw, LOG_STD_MIN, LOG_STD_MAX)
  out_ref[...] = raw * keep_raw + jnp.exp(clipped) * dstd


# ----------------------------------------------------------------------------
# Wrapper: fold affine pre/post-processing, build block-diagonal packs, tile B.
# ----------------------------------------------------------------------------
def _round_up(x, m):
  return -(-x // m) * m


def _prepare_packed_params(params, buffers, n_obs, n_act, mm_dtype):
  f32 = jnp.float32
  E, D, H = params["w1"].shape
  EH = E * H

  s_mean = buffers["state_mean"].astype(f32)
  s_std = buffers["state_std"].astype(f32)
  a_mean = buffers["action_mean"].astype(f32)
  a_std = buffers["action_std"].astype(f32)
  d_mean = buffers["delta_mean"].astype(f32)
  d_std = buffers["delta_std"].astype(f32)

  # Layer 1: fold input normalization, pack members along the output dim.
  w1 = params["w1"].astype(f32)                     # (E, D, H)
  w1_s, w1_a = w1[:, :n_obs, :], w1[:, n_obs:, :]
  w1s = w1_s / s_std[None, :, None]
  w1a = w1_a / a_std[None, :, None]
  b1 = (params["b1"].astype(f32)
        - jnp.einsum("d,edh->eh", s_mean / s_std, w1_s)
        - jnp.einsum("d,edh->eh", a_mean / a_std, w1_a))          # (E, H)
  w1s_p = jnp.transpose(w1s, (1, 0, 2)).reshape(n_obs, EH)
  w1a_p = jnp.transpose(w1a, (1, 0, 2)).reshape(n_act, EH)

  def block_diag(w):                                 # (E, H, H) -> (EH, EH)
    out = jnp.zeros((EH, EH), f32)
    for e in range(E):
      out = out.at[e * H:(e + 1) * H, e * H:(e + 1) * H].set(w[e])
    return out

  w2 = block_diag(params["w2"].astype(f32))
  w3 = block_diag(params["w3"].astype(f32))
  w4 = block_diag(params["w4"].astype(f32))

  # Fused head block (per member, H in -> H lanes out); fold delta de-norm
  # into the mean columns.
  wm = params["wm"].astype(f32) * d_std[None, None, :]            # (E, H, n_obs)
  bm = params["bm"].astype(f32) * d_std[None, :] + d_mean[None, :]
  wh_e = jnp.zeros((E, H, H), f32)
  wh_e = wh_e.at[:, :, 0:n_obs].set(wm)
  wh_e = wh_e.at[:, :, n_obs:2 * n_obs].set(params["wl"].astype(f32))
  wh_e = wh_e.at[:, :, 2 * n_obs:2 * n_obs + 1].set(params["wr"].astype(f32))
  wh_e = wh_e.at[:, :, 2 * n_obs + 1:2 * n_obs + 2].set(params["wd"].astype(f32))
  wh = block_diag(wh_e)

  bh_e = jnp.zeros((E, H), f32)
  bh_e = bh_e.at[:, 0:n_obs].set(bm)
  bh_e = bh_e.at[:, n_obs:2 * n_obs].set(params["bl"].astype(f32))
  bh_e = bh_e.at[:, 2 * n_obs].set(params["br"].astype(f32)[:, 0])
  bh_e = bh_e.at[:, 2 * n_obs + 1].set(params["bd"].astype(f32)[:, 0])

  # Aux lane vectors: delta_std on std lanes (else 0), keep-raw mask (else 1).
  dstd_e = jnp.zeros((E, H), f32).at[:, n_obs:2 * n_obs].set(
      jnp.broadcast_to(d_std, (E, n_obs)))
  keep_e = jnp.ones((E, H), f32).at[:, n_obs:2 * n_obs].set(0.0)

  bias_aux = jnp.stack([
      b1.reshape(EH),
      params["b2"].astype(f32).reshape(EH),
      params["b3"].astype(f32).reshape(EH),
      params["b4"].astype(f32).reshape(EH),
      bh_e.reshape(EH),
      dstd_e.reshape(EH),
      keep_e.reshape(EH),
  ], axis=0)                                                     # (7, EH) f32

  w_big = jnp.concatenate([w2, w3, w4, wh], axis=0).astype(mm_dtype)  # (4EH, EH)
  return (w1s_p.astype(mm_dtype), w1a_p.astype(mm_dtype), w_big, bias_aux)


def ensemble_dynamics_forward(states, actions, params, buffers, *,
                              mm_dtype=jnp.bfloat16, batch_tile=1024):
  """Forward pass matching EnsembleDynamicsNetwork.forward.

  Returns (denorm_means, denorm_stds, rewards, done_logits) with shapes
  ([E,B,n_obs], [E,B,n_obs], [E,B,1], [E,B,1]).
  """
  f32 = jnp.float32
  states = states.astype(f32)
  actions = actions.astype(f32)
  B, n_obs = states.shape
  n_act = actions.shape[1]
  E, D, H = params["w1"].shape
  EH = E * H
  assert D == n_obs + n_act
  # Per-member packed head [mean|logstd|reward|done] must fit in an H-lane slot.
  assert 2 * n_obs + 2 <= H, "head slot wider than hidden_dim not supported yet"

  w1s_p, w1a_p, w_big, bias_aux = _prepare_packed_params(
      params, buffers, n_obs, n_act, mm_dtype)

  # Batch tiling: single tile for tiny B, two "parallel" tiles for mid-size B
  # (v7x dual-TC), fixed 1024-row tiles for large B.
  if B <= 256:
    tb = _round_up(max(B, 1), 8)
  elif B <= 2 * batch_tile:
    tb = _round_up(-(-B // 2), 8)
  else:
    tb = batch_tile
  b_pad = _round_up(B, tb)
  if b_pad != B:
    states = jnp.pad(states, ((0, b_pad - B), (0, 0)))
    actions = jnp.pad(actions, ((0, b_pad - B), (0, 0)))
  num_bt = b_pad // tb

  const = lambda shp: pl.BlockSpec(shp, lambda i: (0, 0))
  in_specs = [
      pl.BlockSpec((tb, n_obs), lambda i: (i, 0)),   # states (batch-tiled)
      pl.BlockSpec((tb, n_act), lambda i: (i, 0)),   # actions (batch-tiled)
      const((n_obs, EH)),                            # packed layer-1 state W
      const((n_act, EH)),                            # packed layer-1 action W
      const((4 * EH, EH)),                           # block-diag W2|W3|W4|Whead
      const((7, EH)),                                # biases + dstd + keep mask
  ]
  out_specs = pl.BlockSpec((tb, EH), lambda i: (i, 0))

  kernel = functools.partial(
      _ensemble_kernel, n_obs=n_obs, hidden=H, n_ensembles=E)
  packed = pl.pallas_call(
      kernel,
      out_shape=jax.ShapeDtypeStruct((b_pad, EH), f32),
      grid_spec=pltpu.PrefetchScalarGridSpec(
          num_scalar_prefetch=0,
          grid=(num_bt,),
          in_specs=in_specs,
          out_specs=out_specs,
      ),
      compiler_params=pltpu.CompilerParams(
          dimension_semantics=("parallel",)),
  )(states, actions, w1s_p, w1a_p, w_big, bias_aux)

  packed = packed[:B].reshape(B, E, H).transpose(1, 0, 2)   # (E, B, H)
  denorm_means = packed[..., 0:n_obs]
  denorm_stds = packed[..., n_obs:2 * n_obs]
  rewards = packed[..., 2 * n_obs:2 * n_obs + 1]
  done_logits = packed[..., 2 * n_obs + 1:2 * n_obs + 2]
  return denorm_means, denorm_stds, rewards, done_logits


# ----------------------------------------------------------------------------
# Parameter init (stand-in for torch.nn.Linear default init) and a plain-JAX
# reference mirroring the PyTorch module exactly.
# ----------------------------------------------------------------------------
def _torch_linear_init(key, fan_in, fan_out):
  kw, kb = jax.random.split(key)
  bound = 1.0 / math.sqrt(fan_in)
  w = jax.random.uniform(kw, (fan_in, fan_out), jnp.float32, -bound, bound)
  b = jax.random.uniform(kb, (fan_out,), jnp.float32, -bound, bound)
  return w, b


def init_params(key, num_ensembles, input_dim, hidden_dim, output_dim):
  layer_dims = [
      ("w1", "b1", input_dim, hidden_dim),
      ("w2", "b2", hidden_dim, hidden_dim),
      ("w3", "b3", hidden_dim, hidden_dim),
      ("w4", "b4", hidden_dim, hidden_dim),
      ("wm", "bm", hidden_dim, output_dim),
      ("wl", "bl", hidden_dim, output_dim),
      ("wr", "br", hidden_dim, 1),
      ("wd", "bd", hidden_dim, 1),
  ]
  params = {}
  keys = jax.random.split(key, num_ensembles * len(layer_dims)).reshape(
      num_ensembles, len(layer_dims), 2)
  for li, (wn, bn, fi, fo) in enumerate(layer_dims):
    ws, bs = [], []
    for e in range(num_ensembles):
      w, b = _torch_linear_init(keys[e, li], fi, fo)
      ws.append(w)
      bs.append(b)
    params[wn] = jnp.stack(ws, axis=0)   # (E, fi, fo)  (torch weight transposed)
    params[bn] = jnp.stack(bs, axis=0)   # (E, fo)
  return params


def reference_forward(states, actions, params, buffers):
  ns = (states - buffers["state_mean"]) / buffers["state_std"]
  na = (actions - buffers["action_mean"]) / buffers["action_std"]
  x = jnp.concatenate([ns, na], axis=1)
  E = params["w1"].shape[0]
  means, stds, rews, dones = [], [], [], []
  for e in range(E):
    h = x
    for wn, bn in [("w1", "b1"), ("w2", "b2"), ("w3", "b3"), ("w4", "b4")]:
      h = jnp.maximum(h @ params[wn][e] + params[bn][e], 0.0)
    mean = h @ params["wm"][e] + params["bm"][e]
    logstd = jnp.clip(h @ params["wl"][e] + params["bl"][e],
                      LOG_STD_MIN, LOG_STD_MAX)
    rew = h @ params["wr"][e] + params["br"][e]
    done = h @ params["wd"][e] + params["bd"][e]
    means.append(mean * buffers["delta_std"] + buffers["delta_mean"])
    stds.append(jnp.exp(logstd) * buffers["delta_std"])
    rews.append(rew)
    dones.append(done)
  return (jnp.stack(means), jnp.stack(stds), jnp.stack(rews), jnp.stack(dones))


if __name__ == "__main__":
  B = 8          # batch
  n_obs = 8      # observation dim
  n_act = 4      # action dim
  hidden = 32    # args.hidden_dim
  E = 4          # args.num_ensembles  (E*hidden = 128 -> full MXU width)
  D = n_obs + n_act

  key = jax.random.PRNGKey(0)
  k_states, k_actions, k_params, k_buf = jax.random.split(key, 4)

  states = jax.random.normal(k_states, (B, n_obs), jnp.float32)
  actions = jax.random.normal(k_actions, (B, n_act), jnp.float32)

  params = init_params(k_params, E, D, hidden, n_obs)

  kb1, kb2, kb3, kb4 = jax.random.split(k_buf, 4)
  buffers = {
      "state_mean": 0.1 * jax.random.normal(kb1, (n_obs,), jnp.float32),
      "state_std": jnp.abs(jax.random.normal(kb2, (n_obs,), jnp.float32)) + 0.5,
      "action_mean": jnp.zeros((n_act,), jnp.float32),
      "action_std": jnp.ones((n_act,), jnp.float32),
      "delta_mean": 0.05 * jax.random.normal(kb3, (n_obs,), jnp.float32),
      "delta_std": jnp.abs(jax.random.normal(kb4, (n_obs,), jnp.float32)) + 0.5,
  }

  ref = reference_forward(states, actions, params, buffers)

  # f32 MXU path: tight check against the torch-exact reference.
  fwd_f32 = jax.jit(functools.partial(
      ensemble_dynamics_forward, mm_dtype=jnp.float32))
  out_f32 = jax.block_until_ready(fwd_f32(states, actions, params, buffers))
  for o, r in zip(out_f32, ref):
    assert o.shape == r.shape, (o.shape, r.shape)
    assert jnp.allclose(o, r, atol=2e-3, rtol=2e-3), float(jnp.max(jnp.abs(o - r)))

  # bf16 MXU path (default, for v6e/v7x throughput): looser tolerance.
  fwd_bf16 = jax.jit(functools.partial(
      ensemble_dynamics_forward, mm_dtype=jnp.bfloat16))
  out_bf16 = jax.block_until_ready(fwd_bf16(states, actions, params, buffers))
  for o, r in zip(out_bf16, ref):
    assert o.shape == r.shape, (o.shape, r.shape)
    assert jnp.allclose(o, r, atol=5e-2, rtol=5e-2), float(jnp.max(jnp.abs(o - r)))

  print("KERNEL_OK")
</pallas_src>

<mosaic_0001>
module attributes {stable_mosaic.version = 11 : i64} {
  func.func @_ensemble_kernel(%arg0: i32, %arg1: memref<8x8xf32, #tpu.memory_space<vmem>>, %arg2: memref<8x4xf32, #tpu.memory_space<vmem>>, %arg3: memref<8x128xf32, #tpu.memory_space<vmem>>, %arg4: memref<4x128xf32, #tpu.memory_space<vmem>>, %arg5: memref<512x128xf32, #tpu.memory_space<vmem>>, %arg6: memref<7x128xf32, #tpu.memory_space<vmem>>, %arg7: memref<8x128xf32, #tpu.memory_space<vmem>>) attributes {dimension_semantics = [#tpu.dimension_semantics<parallel>], iteration_bounds = array<i64: 1>, scalar_prefetch = 0 : i64, scratch_operands = 0 : i64, tpu.core_type = #tpu.core_type<tc>, window_params = [{transform_indices = @transform_0, window_bounds = array<i64: 8, 8>}, {transform_indices = @transform_1, window_bounds = array<i64: 8, 4>}, {pipeline_mode = #tpu.pipeline_mode<synchronous>, transform_indices = @transform_2, window_bounds = array<i64: 8, 128>}, {pipeline_mode = #tpu.pipeline_mode<synchronous>, transform_indices = @transform_3, window_bounds = array<i64: 4, 128>}, {pipeline_mode = #tpu.pipeline_mode<synchronous>, transform_indices = @transform_4, window_bounds = array<i64: 512, 128>}, {pipeline_mode = #tpu.pipeline_mode<synchronous>, transform_indices = @transform_5, window_bounds = array<i64: 7, 128>}, {transform_indices = @transform_6, window_bounds = array<i64: 8, 128>}]} {
    %c0 = arith.constant 0 : index
    %c0_0 = arith.constant 0 : index
    %0 = vector.load %arg6[%c0, %c0_0] : memref<7x128xf32, #tpu.memory_space<vmem>>, vector<7x128xf32>
    %1 = vector.extract_strided_slice %0 {offsets = [0, 0], sizes = [1, 128], strides = [1, 1]} : vector<7x128xf32> to vector<1x128xf32>
    %2 = vector.extract_strided_slice %0 {offsets = [1, 0], sizes = [1, 128], strides = [1, 1]} : vector<7x128xf32> to vector<1x128xf32>
    %3 = vector.extract_strided_slice %0 {offsets = [2, 0], sizes = [1, 128], strides = [1, 1]} : vector<7x128xf32> to vector<1x128xf32>
    %4 = vector.extract_strided_slice %0 {offsets = [3, 0], sizes = [1, 128], strides = [1, 1]} : vector<7x128xf32> to vector<1x128xf32>
    %5 = vector.extract_strided_slice %0 {offsets = [4, 0], sizes = [1, 128], strides = [1, 1]} : vector<7x128xf32> to vector<1x128xf32>
    %6 = vector.extract_strided_slice %0 {offsets = [5, 0], sizes = [1, 128], strides = [1, 1]} : vector<7x128xf32> to vector<1x128xf32>
    %7 = vector.extract_strided_slice %0 {offsets = [6, 0], sizes = [1, 128], strides = [1, 1]} : vector<7x128xf32> to vector<1x128xf32>
    %c0_1 = arith.constant 0 : index
    %c0_2 = arith.constant 0 : index
    %8 = vector.load %arg1[%c0_1, %c0_2] : memref<8x8xf32, #tpu.memory_space<vmem>>, vector<8x8xf32>
    %c0_3 = arith.constant 0 : index
    %c0_4 = arith.constant 0 : index
    %9 = vector.load %arg2[%c0_3, %c0_4] : memref<8x4xf32, #tpu.memory_space<vmem>>, vector<8x4xf32>
    %c0_5 = arith.constant 0 : index
    %c0_6 = arith.constant 0 : index
    %10 = vector.load %arg3[%c0_5, %c0_6] : memref<8x128xf32, #tpu.memory_space<vmem>>, vector<8x128xf32>
    %cst = arith.constant dense<0.000000e+00> : vector<8x128xf32>
    %11 = tpu.matmul %8, %10, %cst {dimension_numbers = #tpu.dot_dimension_numbers<[1], [0], [0], [1], [0, 0, 1, 1], [], []>} : vector<8x8xf32>, vector<8x128xf32>, vector<8x128xf32> -> vector<8x128xf32>
    %c0_7 = arith.constant 0 : index
    %c0_8 = arith.constant 0 : index
    %12 = vector.load %arg4[%c0_7, %c0_8] : memref<4x128xf32, #tpu.memory_space<vmem>>, vector<4x128xf32>
    %cst_9 = arith.constant dense<0.000000e+00> : vector<8x128xf32>
    %13 = tpu.matmul %9, %12, %cst_9 {dimension_numbers = #tpu.dot_dimension_numbers<[1], [0], [0], [1], [0, 0, 1, 1], [], []>} : vector<8x4xf32>, vector<4x128xf32>, vector<8x128xf32> -> vector<8x128xf32>
    %14 = arith.addf %11, %13 : vector<8x128xf32>
    %15 = vector.broadcast %1 : vector<1x128xf32> to vector<8x128xf32>
    %16 = arith.addf %14, %15 : vector<8x128xf32>
    %cst_10 = arith.constant 0.000000e+00 : f32
    %17 = vector.broadcast %cst_10 : f32 to vector<8x128xf32>
    %18 = arith.maximumf %16, %17 : vector<8x128xf32>
    %c0_11 = arith.constant 0 : index
    %c0_12 = arith.constant 0 : index
    %19 = vector.load %arg5[%c0_11, %c0_12] : memref<512x128xf32, #tpu.memory_space<vmem>>, vector<128x128xf32>
    %cst_13 = arith.constant dense<0.000000e+00> : vector<8x128xf32>
    %20 = tpu.matmul %18, %19, %cst_13 {dimension_numbers = #tpu.dot_dimension_numbers<[1], [0], [0], [1], [0, 0, 1, 1], [], []>} : vector<8x128xf32>, vector<128x128xf32>, vector<8x128xf32> -> vector<8x128xf32>
    %21 = vector.broadcast %2 : vector<1x128xf32> to vector<8x128xf32>
    %22 = arith.addf %20, %21 : vector<8x128xf32>
    %cst_14 = arith.constant 0.000000e+00 : f32
    %23 = vector.broadcast %cst_14 : f32 to vector<8x128xf32>
    %24 = arith.maximumf %22, %23 : vector<8x128xf32>
    %c128 = arith.constant 128 : index
    %c0_15 = arith.constant 0 : index
    %25 = vector.load %arg5[%c128, %c0_15] : memref<512x128xf32, #tpu.memory_space<vmem>>, vector<128x128xf32>
    %cst_16 = arith.constant dense<0.000000e+00> : vector<8x128xf32>
    %26 = tpu.matmul %24, %25, %cst_16 {dimension_numbers = #tpu.dot_dimension_numbers<[1], [0], [0], [1], [0, 0, 1, 1], [], []>} : vector<8x128xf32>, vector<128x128xf32>, vector<8x128xf32> -> vector<8x128xf32>
    %27 = vector.broadcast %3 : vector<1x128xf32> to vector<8x128xf32>
    %28 = arith.addf %26, %27 : vector<8x128xf32>
    %cst_17 = arith.constant 0.000000e+00 : f32
    %29 = vector.broadcast %cst_17 : f32 to vector<8x128xf32>
    %30 = arith.maximumf %28, %29 : vector<8x128xf32>
    %c256 = arith.constant 256 : index
    %c0_18 = arith.constant 0 : index
    %31 = vector.load %arg5[%c256, %c0_18] : memref<512x128xf32, #tpu.memory_space<vmem>>, vector<128x128xf32>
    %cst_19 = arith.constant dense<0.000000e+00> : vector<8x128xf32>
    %32 = tpu.matmul %30, %31, %cst_19 {dimension_numbers = #tpu.dot_dimension_numbers<[1], [0], [0], [1], [0, 0, 1, 1], [], []>} : vector<8x128xf32>, vector<128x128xf32>, vector<8x128xf32> -> vector<8x128xf32>
    %33 = vector.broadcast %4 : vector<1x128xf32> to vector<8x128xf32>
    %34 = arith.addf %32, %33 : vector<8x128xf32>
    %cst_20 = arith.constant 0.000000e+00 : f32
    %35 = vector.broadcast %cst_20 : f32 to vector<8x128xf32>
    %36 = arith.maximumf %34, %35 : vector<8x128xf32>
    %c384 = arith.constant 384 : index
    %c0_21 = arith.constant 0 : index
    %37 = vector.load %arg5[%c384, %c0_21] : memref<512x128xf32, #tpu.memory_space<vmem>>, vector<128x128xf32>
    %cst_22 = arith.constant dense<0.000000e+00> : vector<8x128xf32>
    %38 = tpu.matmul %36, %37, %cst_22 {dimension_numbers = #tpu.dot_dimension_numbers<[1], [0], [0], [1], [0, 0, 1, 1], [], []>} : vector<8x128xf32>, vector<128x128xf32>, vector<8x128xf32> -> vector<8x128xf32>
    %39 = vector.broadcast %5 : vector<1x128xf32> to vector<8x128xf32>
    %40 = arith.addf %38, %39 : vector<8x128xf32>
    %cst_23 = arith.constant -1.000000e+01 : f32
    %cst_24 = arith.constant 5.000000e-01 : f32
    %41 = vector.broadcast %cst_23 : f32 to vector<8x128xf32>
    %42 = arith.maximumf %41, %40 : vector<8x128xf32>
    %43 = vector.broadcast %cst_24 : f32 to vector<8x128xf32>
    %44 = arith.minimumf %43, %42 : vector<8x128xf32>
    %45 = vector.broadcast %7 : vector<1x128xf32> to vector<8x128xf32>
    %46 = arith.mulf %40, %45 : vector<8x128xf32>
    %47 = math.exp %44 : vector<8x128xf32>
    %48 = vector.broadcast %6 : vector<1x128xf32> to vector<8x128xf32>
    %49 = arith.mulf %47, %48 : vector<8x128xf32>
    %50 = arith.addf %46, %49 : vector<8x128xf32>
    %c0_25 = arith.constant 0 : index
    %c0_26 = arith.constant 0 : index
    %51 = vector.load %arg7[%c0_25, %c0_26] : memref<8x128xf32, #tpu.memory_space<vmem>>, vector<8x128xf32>
    tpu.vector_store %arg7[%c0_25, %c0_26], %50 {strides = array<i32>} : memref<8x128xf32, #tpu.memory_space<vmem>>, vector<8x128xf32>,
    return
  }
  func.func @transform_0(%arg0: i32) -> (i32, i32) {
    %c0_i32 = arith.constant 0 : i32
    %c0_i32_0 = arith.constant 0 : i32
    return %arg0, %c0_i32 : i32, i32
  }
  func.func @transform_1(%arg0: i32) -> (i32, i32) {
    %c0_i32 = arith.constant 0 : i32
    %c0_i32_0 = arith.constant 0 : i32
    return %arg0, %c0_i32 : i32, i32
  }
  func.func @transform_2(%arg0: i32) -> (i32, i32) {
    %c0_i32 = arith.constant 0 : i32
    %c0_i32_0 = arith.constant 0 : i32
    %c0_i32_1 = arith.constant 0 : i32
    return %c0_i32, %c0_i32_0 : i32, i32
  }
  func.func @transform_3(%arg0: i32) -> (i32, i32) {
    %c0_i32 = arith.constant 0 : i32
    %c0_i32_0 = arith.constant 0 : i32
    %c0_i32_1 = arith.constant 0 : i32
    return %c0_i32, %c0_i32_0 : i32, i32
  }
  func.func @transform_4(%arg0: i32) -> (i32, i32) {
    %c0_i32 = arith.constant 0 : i32
    %c0_i32_0 = arith.constant 0 : i32
    %c0_i32_1 = arith.constant 0 : i32
    return %c0_i32, %c0_i32_0 : i32, i32
  }
  func.func @transform_5(%arg0: i32) -> (i32, i32) {
    %c0_i32 = arith.constant 0 : i32
    %c0_i32_0 = arith.constant 0 : i32
    %c0_i32_1 = arith.constant 0 : i32
    return %c0_i32, %c0_i32_0 : i32, i32
  }
  func.func @transform_6(%arg0: i32) -> (i32, i32) {
    %c0_i32 = arith.constant 0 : i32
    %c0_i32_0 = arith.constant 0 : i32
    return %arg0, %c0_i32 : i32, i32
  }
}

</mosaic_0001>

<llo_original>
// kernel: div.18
$region0: #{div.18}
  #allocation0 [shape = 's32[1]{0}', space=sflag, size = 0x4, scoped, tag = 'scoped memory for div.18']
  %s0 = inlined_call_operand.vmem [shape: f32[8], index: 0, kind: input, shape index: {}]
  %s1 = inlined_call_operand.vmem [shape: f32[8], index: 1, kind: input, shape index: {}]
  %s2 = inlined_call_operand.vmem [shape: f32[8], index: 2, kind: output, shape index: {}]
  %v3 = vld [vmem:[%s0] sm:$0x1]
  %v4 = vld [vmem:[%s1] sm:$0x1]
  %5 = xla_tuple %v3, %v4
  %6 = xla_tuple %5
  %v7 = vrcp.pop %v4
  %v8 = vmul.f32 %v4, %v7
  %v9 = vsub.f32 1.0, %v8
  %v10 = vmul.f32 %v7, %v9
  %v11 = vadd.f32 %v7, %v10
  %vm12 = vweird.f32 %v4
  %vm13 = vweird.f32 %v7
  %vm14 = vmor %vm12, %vm13
  %v15 = vsel %vm14, %v7, %v11
  %v16 = vand.u32 2147483647, %v4
  %vm17 = vcmp.eq.f32.partialorder %v16, 8.507059e+37
  %v18 = vand.u32 %v4, 2147483648
  %v19 = vor.u32 1.1754944e-38, %v18
  %v20 = vsel %vm17, %v19, %v15
  %v21 = vmul.f32 %v3, %v20
  %22 = xla_tuple %v21
  %23 = vst [vmem:[%s2] sm:$0x1] %v21

// kernel: div.19
$region0: #{div.19}
  #allocation0 [shape = 's32[1]{0}', space=sflag, size = 0x4, scoped, tag = 'scoped memory for div.19']
  %s0 = inlined_call_operand.vmem [shape: f32[4], index: 0, kind: input, shape index: {}]
  %s1 = inlined_call_operand.vmem [shape: f32[4], index: 1, kind: input, shape index: {}]
  %s2 = inlined_call_operand.vmem [shape: f32[4], index: 2, kind: output, shape index: {}]
  %v3 = vld [vmem:[%s0] sm:$0x1]
  %v4 = vld [vmem:[%s1] sm:$0x1]
  %5 = xla_tuple %v3, %v4
  %6 = xla_tuple %5
  %v7 = vrcp.pop %v4
  %v8 = vmul.f32 %v4, %v7
  %v9 = vsub.f32 1.0, %v8
  %v10 = vmul.f32 %v7, %v9
  %v11 = vadd.f32 %v7, %v10
  %vm12 = vweird.f32 %v4
  %vm13 = vweird.f32 %v7
  %vm14 = vmor %vm12, %vm13
  %v15 = vsel %vm14, %v7, %v11
  %v16 = vand.u32 2147483647, %v4
  %vm17 = vcmp.eq.f32.partialorder %v16, 8.507059e+37
  %v18 = vand.u32 %v4, 2147483648
  %v19 = vor.u32 1.1754944e-38, %v18
  %v20 = vsel %vm17, %v19, %v15
  %v21 = vmul.f32 %v3, %v20
  %22 = xla_tuple %v21
  %23 = vst [vmem:[%s2] sm:$0x1] %v21

// kernel: ensemble_dynamics_forward.1
$region0: #{ensemble_dynamics_forward.1}
  #allocation0 [shape = 'u32[]', space=smem, size = 0x4, offset = 0x4, fixed_abs, tag = 'smem constant byte address 0x4 - core index']
  #allocation1 [shape = 'u32[72,128]{1,0:T(1,128)}', space=vmem, size = 0x9000, scoped, tag = 'internal scratch']
  %s0 = inlined_call_operand.vmem [shape: f32[8,8], index: 0, kind: input, shape index: {}]
  %s1 = inlined_call_operand.vmem [shape: f32[8,4], index: 1, kind: input, shape index: {}]
  %s2 = inlined_call_operand.vmem [shape: f32[8,128], index: 2, kind: input, shape index: {}]
  %s3 = inlined_call_operand.vmem [shape: f32[4,128], index: 3, kind: input, shape index: {}]
  %s4 = inlined_call_operand.vmem [shape: f32[512,128], index: 4, kind: input, shape index: {}]
  %s5 = inlined_call_operand.vmem [shape: f32[7,128], index: 5, kind: input, shape index: {}]
  %s6 = inlined_call_operand.vmem [shape: f32[8,128], index: 6, kind: output, shape index: {}]
  %s7 = sld [smem:[#allocation0]]
  $region34: #{ensemble_dynamics_forward.1} parent=0
    _
  %s9 = ssub.s32 1, %s7
  %s10 = scalar_select 0, %s9, %s7
  // Predicated region
  $region2: #{ensemble_dynamics_forward.1} parent=0 // pred_check
    _
  $region3: #{ensemble_dynamics_forward.1} parent=0 // pred_check_branch
    %12 = sbr.rel (0) target = $region5
  $region4: #{ensemble_dynamics_forward.1} parent=0 // pred_region
    _
  $region5: #{ensemble_dynamics_forward.1} parent=0 // pred_fallthru
    _
  // Predicated region
  $region6: #{ensemble_dynamics_forward.1} parent=0 // pred_check
    _
  $region7: #{ensemble_dynamics_forward.1} parent=0 // pred_check_branch
    %14 = sbr.rel (0) target = $region9
  $region8: #{ensemble_dynamics_forward.1} parent=0 // pred_region
    _
  $region9: #{ensemble_dynamics_forward.1} parent=0 // pred_fallthru
    _
  // Predicated region
  $region10: #{ensemble_dynamics_forward.1} parent=0 // pred_check
    _
  $region11: #{ensemble_dynamics_forward.1} parent=0 // pred_check_branch
    %16 = sbr.rel (0) target = $region13
  $region12: #{ensemble_dynamics_forward.1} parent=0 // pred_region
    _
  $region13: #{ensemble_dynamics_forward.1} parent=0 // pred_fallthru
    _
  // Predicated region
  $region14: #{ensemble_dynamics_forward.1} parent=0 // pred_check
    _
  $region15: #{ensemble_dynamics_forward.1} parent=0 // pred_check_branch
    %18 = sbr.rel (0) target = $region17
  $region16: #{ensemble_dynamics_forward.1} parent=0 // pred_region
    _
  $region17: #{ensemble_dynamics_forward.1} parent=0 // pred_fallthru
    _
  // Predicated region
  $region18: #{ensemble_dynamics_forward.1} parent=0 // pred_check
    _
  $region19: #{ensemble_dynamics_forward.1} parent=0 // pred_check_branch
    %20 = sbr.rel (0) target = $region21
  $region20: #{ensemble_dynamics_forward.1} parent=0 // pred_region
    _
  $region21: #{ensemble_dynamics_forward.1} parent=0 // pred_fallthru
    _
  // Predicated region
  $region22: #{ensemble_dynamics_forward.1} parent=0 // pred_check
    _
  $region23: #{ensemble_dynamics_forward.1} parent=0 // pred_check_branch
    %22 = sbr.rel (0) target = $region25
  $region24: #{ensemble_dynamics_forward.1} parent=0 // pred_region
    _
  $region25: #{ensemble_dynamics_forward.1} parent=0 // pred_fallthru
    _
  %v23 = vld [vmem:[%s5] sm:$0x7f]
  %v24 = vld [vmem:[%s0] sm:$0xff]
  %v25 = vld [vmem:[%s1] sm:$0xff]
  %v26 = vld [vmem:[%s2] sm:$0xff]
  %v27 = vld [vmem:[%s3] sm:$0xf]
  %vm28 = vcmask 31744
  %v30 = vsel %vm28, %v25, 0
  %vm32 = vcmask 1043456
  %v34 = vsel %vm32, %v27, 0
  %36 = vmatpush.msra.mxu0 0.0
  %37 = vmatpush.msra.mxu0 0.0
  %38 = vmatpush.msra.mxu0 0.0
  %39 = vmatpush.msra.mxu0 0.0
  %40 = vmatpush.msra.mxu0 0.0
  %41 = vmatpush.msra.mxu0 0.0
  %42 = vmatpush.msra.mxu0 0.0
  %43 = vmatpush.msra.mxu0 0.0
  %44 = vmatpush.msra.mxu0 0.0
  %45 = vmatpush.msra.mxu0 0.0
  %46 = vmatpush.msra.mxu0 0.0
  %47 = vmatpush.msra.mxu0 0.0
  %48 = vmatpush.msra.mxu0 0.0
  %49 = vmatpush.msra.mxu0 0.0
  %50 = vmatpush.msra.mxu0 0.0
  %51 = vmatpush.msra.mxu0 %v34
  %52 = vmatmul.f32.gmra.mxu0 %v30
  %v53 = vpop.f32.mrf.mxu0
  %v54 = vadd.f32 0.0, %v53
  %55 = vdwg.mxu0
  %vm56 = vcmask 64512
  %v58 = vsel %vm56, %v24, 0
  %60 = vmatpush.msra.mxu0 0.0
  %61 = vmatpush.msra.mxu0 0.0
  %62 = vmatpush.msra.mxu0 0.0
  %63 = vmatpush.msra.mxu0 0.0
  %64 = vmatpush.msra.mxu0 0.0
  %65 = vmatpush.msra.mxu0 0.0
  %66 = vmatpush.msra.mxu0 0.0
  %67 = vmatpush.msra.mxu0 0.0
  %68 = vmatpush.msra.mxu0 0.0
  %69 = vmatpush.msra.mxu0 0.0
  %70 = vmatpush.msra.mxu0 0.0
  %71 = vmatpush.msra.mxu0 0.0
  %72 = vmatpush.msra.mxu0 0.0
  %73 = vmatpush.msra.mxu0 0.0
  %74 = vmatpush.msra.mxu0 0.0
  %75 = vmatpush.msra.mxu0 %v26
  %76 = vmatmul.f32.gmra.mxu0 %v58
  %v77 = vpop.f32.mrf.mxu0
  %v78 = vadd.f32 %v54, %v77
  %79 = vdwg.mxu0
  %v80 = vperm.slane %v23, 0
  %v81 = vadd.f32 %v78, %v80
  %v82 = vmax.f32 %v81, 0.0
  %v83 = vld [vmem:[%s4] sm:$0xff]
  %v84 = vld [vmem:[%s4 + $0x8] sm:$0xff]
  %v85 = vld [vmem:[%s4 + $0x10] sm:$0xff]
  %v86 = vld [vmem:[%s4 + $0x18] sm:$0xff]
  %v87 = vld [vmem:[%s4 + $0x20] sm:$0xff]
  %v88 = vld [vmem:[%s4 + $0x28] sm:$0xff]
  %v89 = vld [vmem:[%s4 + $0x30] sm:$0xff]
  %v90 = vld [vmem:[%s4 + $0x38] sm:$0xff]
  %v91 = vld [vmem:[%s4 + $0x40] sm:$0xff]
  %v92 = vld [vmem:[%s4 + $0x48] sm:$0xff]
  %v93 = vld [vmem:[%s4 + $0x50] sm:$0xff]
  %v94 = vld [vmem:[%s4 + $0x58] sm:$0xff]
  %v95 = vld [vmem:[%s4 + $0x60] sm:$0xff]
  %v96 = vld [vmem:[%s4 + $0x68] sm:$0xff]
  %v97 = vld [vmem:[%s4 + $0x70] sm:$0xff]
  %v98 = vld [vmem:[%s4 + $0x78] sm:$0xff]
  %v99 = vperm.slane %v23, 1
  %100 = vmatpush.msra.mxu0 %v98
  %101 = vmatpush.msra.mxu0 %v97
  %102 = vmatpush.msra.mxu0 %v96
  %103 = vmatpush.msra.mxu0 %v95
  %104 = vmatpush.msra.mxu0 %v94
  %105 = vmatpush.msra.mxu0 %v93
  %106 = vmatpush.msra.mxu0 %v92
  %107 = vmatpush.msra.mxu0 %v91
  %108 = vmatpush.msra.mxu0 %v90
  %109 = vmatpush.msra.mxu0 %v89
  %110 = vmatpush.msra.mxu0 %v88
  %111 = vmatpush.msra.mxu0 %v87
  %112 = vmatpush.msra.mxu0 %v86
  %113 = vmatpush.msra.mxu0 %v85
  %114 = vmatpush.msra.mxu0 %v84
  %115 = vmatpush.msra.mxu0 %v83
  %116 = vmatmul.f32.gmra.mxu0 %v82
  %v117 = vpop.f32.mrf.mxu0
  %v118 = vadd.f32 %v99, %v117
  %119 = vdwg.mxu0
  %v120 = vmax.f32 %v118, 0.0
  %v121 = vld [vmem:[%s4 + $0x80] sm:$0xff]
  %v122 = vld [vmem:[%s4 + $0x88] sm:$0xff]
  %v123 = vld [vmem:[%s4 + $0x90] sm:$0xff]
  %v124 = vld [vmem:[%s4 + $0x98] sm:$0xff]
  %v125 = vld [vmem:[%s4 + $0xa0] sm:$0xff]
  %v126 = vld [vmem:[%s4 + $0xa8] sm:$0xff]
  %v127 = vld [vmem:[%s4 + $0xb0] sm:$0xff]
  %v128 = vld [vmem:[%s4 + $0xb8] sm:$0xff]
  %v129 = vld [vmem:[%s4 + $0xc0] sm:$0xff]
  %v130 = vld [vmem:[%s4 + $0xc8] sm:$0xff]
  %v131 = vld [vmem:[%s4 + $0xd0] sm:$0xff]
  %v132 = vld [vmem:[%s4 + $0xd8] sm:$0xff]
  %v133 = vld [vmem:[%s4 + $0xe0] sm:$0xff]
  %v134 = vld [vmem:[%s4 + $0xe8] sm:$0xff]
  %v135 = vld [vmem:[%s4 + $0xf0] sm:$0xff]
  %v136 = vld [vmem:[%s4 + $0xf8] sm:$0xff]
  %v137 = vperm.slane %v23, 2
  %138 = vmatpush.msra.mxu0 %v136
  %139 = vmatpush.msra.mxu0 %v135
  %140 = vmatpush.msra.mxu0 %v134
  %141 = vmatpush.msra.mxu0 %v133
  %142 = vmatpush.msra.mxu0 %v132
  %143 = vmatpush.msra.mxu0 %v131
  %144 = vmatpush.msra.mxu0 %v130
  %145 = vmatpush.msra.mxu0 %v129
  %146 = vmatpush.msra.mxu0 %v128
  %147 = vmatpush.msra.mxu0 %v127
  %148 = vmatpush.msra.mxu0 %v126
  %149 = vmatpush.msra.mxu0 %v125
  %150 = vmatpush.msra.mxu0 %v124
  %151 = vmatpush.msra.mxu0 %v123
  %152 = vmatpush.msra.mxu0 %v122
  %153 = vmatpush.msra.mxu0 %v121
  %154 = vmatmul.f32.gmra.mxu0 %v120
  %v155 = vpop.f32.mrf.mxu0
  %v156 = vadd.f32 %v137, %v155
  %157 = vdwg.mxu0
  %v158 = vmax.f32 %v156, 0.0
  %v159 = vld [vmem:[%s4 + $0x100] sm:$0xff]
  %v160 = vld [vmem:[%s4 + $0x108] sm:$0xff]
  %v161 = vld [vmem:[%s4 + $0x110] sm:$0xff]
  %v162 = vld [vmem:[%s4 + $0x118] sm:$0xff]
  %v163 = vld [vmem:[%s4 + $0x120] sm:$0xff]
  %v164 = vld [vmem:[%s4 + $0x128] sm:$0xff]
  %v165 = vld [vmem:[%s4 + $0x130] sm:$0xff]
  %v166 = vld [vmem:[%s4 + $0x138] sm:$0xff]
  %v167 = vld [vmem:[%s4 + $0x140] sm:$0xff]
  %v168 = vld [vmem:[%s4 + $0x148] sm:$0xff]
  %v169 = vld [vmem:[%s4 + $0x150] sm:$0xff]
  %v170 = vld [vmem:[%s4 + $0x158] sm:$0xff]
  %v171 = vld [vmem:[%s4 + $0x160] sm:$0xff]
  %v172 = vld [vmem:[%s4 + $0x168] sm:$0xff]
  %v173 = vld [vmem:[%s4 + $0x170] sm:$0xff]
  %v174 = vld [vmem:[%s4 + $0x178] sm:$0xff]
  %v175 = vperm.slane %v23, 3
  %176 = vmatpush.msra.mxu0 %v174
  %177 = vmatpush.msra.mxu0 %v173
  %178 = vmatpush.msra.mxu0 %v172
  %179 = vmatpush.msra.mxu0 %v171
  %180 = vmatpush.msra.mxu0 %v170
  %181 = vmatpush.msra.mxu0 %v169
  %182 = vmatpush.msra.mxu0 %v168
  %183 = vmatpush.msra.mxu0 %v167
  %184 = vmatpush.msra.mxu0 %v166
  %185 = vmatpush.msra.mxu0 %v165
  %186 = vmatpush.msra.mxu0 %v164
  %187 = vmatpush.msra.mxu0 %v163
  %188 = vmatpush.msra.mxu0 %v162
  %189 = vmatpush.msra.mxu0 %v161
  %190 = vmatpush.msra.mxu0 %v160
  %191 = vmatpush.msra.mxu0 %v159
  %192 = vmatmul.f32.gmra.mxu0 %v158
  %v193 = vpop.f32.mrf.mxu0
  %v194 = vadd.f32 %v175, %v193
  %195 = vdwg.mxu0
  %v196 = vmax.f32 %v194, 0.0
  %v197 = vld [vmem:[%s4 + $0x180] sm:$0xff]
  %v198 = vld [vmem:[%s4 + $0x188] sm:$0xff]
  %v199 = vld [vmem:[%s4 + $0x190] sm:$0xff]
  %v200 = vld [vmem:[%s4 + $0x198] sm:$0xff]
  %v201 = vld [vmem:[%s4 + $0x1a0] sm:$0xff]
  %v202 = vld [vmem:[%s4 + $0x1a8] sm:$0xff]
  %v203 = vld [vmem:[%s4 + $0x1b0] sm:$0xff]
  %v204 = vld [vmem:[%s4 + $0x1b8] sm:$0xff]
  %v205 = vld [vmem:[%s4 + $0x1c0] sm:$0xff]
  %v206 = vld [vmem:[%s4 + $0x1c8] sm:$0xff]
  %v207 = vld [vmem:[%s4 + $0x1d0] sm:$0xff]
  %v208 = vld [vmem:[%s4 + $0x1d8] sm:$0xff]
  %v209 = vld [vmem:[%s4 + $0x1e0] sm:$0xff]
  %v210 = vld [vmem:[%s4 + $0x1e8] sm:$0xff]
  %v211 = vld [vmem:[%s4 + $0x1f0] sm:$0xff]
  %v212 = vld [vmem:[%s4 + $0x1f8] sm:$0xff]
  %v213 = vperm.slane %v23, 4
  %214 = vmatpush.msra.mxu0 %v212
  %215 = vmatpush.msra.mxu0 %v211
  %216 = vmatpush.msra.mxu0 %v210
  %217 = vmatpush.msra.mxu0 %v209
  %218 = vmatpush.msra.mxu0 %v208
  %219 = vmatpush.msra.mxu0 %v207
  %220 = vmatpush.msra.mxu0 %v206
  %221 = vmatpush.msra.mxu0 %v205
  %222 = vmatpush.msra.mxu0 %v204
  %223 = vmatpush.msra.mxu0 %v203
  %224 = vmatpush.msra.mxu0 %v202
  %225 = vmatpush.msra.mxu0 %v201
  %226 = vmatpush.msra.mxu0 %v200
  %227 = vmatpush.msra.mxu0 %v199
  %228 = vmatpush.msra.mxu0 %v198
  %229 = vmatpush.msra.mxu0 %v197
  %230 = vmatmul.f32.gmra.mxu0 %v196
  %v231 = vpop.f32.mrf.mxu0
  %v232 = vadd.f32 %v213, %v231
  %233 = vdwg.mxu0
  %v234 = vmax.f32 %v232, -10.0
  %v235 = vmin.f32 %v234, 0.5
  %v236 = vperm.slane %v23, 6
  %v237 = vmul.f32 %v232, %v236
  %v238 = vmul.f32 %v235, 1.442695
  %v239 = vpow.pop %v238
  %v240 = vperm.slane %v23, 5
  %v241 = vmul.f32 %v239, %v240
  %v242 = vadd.f32 %v237, %v241
  %243 = vst [vmem:[%s6] sm:$0xff] %v242
  // Predicated region
  $region26: #{ensemble_dynamics_forward.1} parent=0 // pred_check
    _
  $region27: #{ensemble_dynamics_forward.1} parent=0 // pred_check_branch
    %245 = sbr.rel (0) target = $region29
  $region28: #{ensemble_dynamics_forward.1} parent=0 // pred_region
    _
  $region29: #{ensemble_dynamics_forward.1} parent=0 // pred_fallthru
    _
  // Predicated region
  $region30: #{ensemble_dynamics_forward.1} parent=0 // pred_check
    _
  $region31: #{ensemble_dynamics_forward.1} parent=0 // pred_check_branch
    %247 = sbr.rel (0) target = $region33
  $region32: #{ensemble_dynamics_forward.1} parent=0 // pred_region
    _
  $region33: #{ensemble_dynamics_forward.1} parent=0 // pred_fallthru
    _

</llo_original>
